<compile_context>
chip_gen: v5e
topology: v5e:2x2
jax: 0.10.0
libtpu: 0.0.40
codegen_flags: <defaults>
</compile_context>

<pallas_src>
import jax
import jax.numpy as jnp
from jax.experimental import pallas as pl
from jax.experimental.pallas import tpu as pltpu

_LANE = 128
_SUBLANE = 8


def _make_simple_kernel(mode: str, inv_c: float):
    """Whole-C-per-block kernel. Block shapes: x (TB, C, THW) -> o (TB, 1, THW)."""
    if mode == "avg":
        def kernel(x_ref, o_ref):
            x = x_ref[...].astype(jnp.float32)                    # (TB, C, THW)
            o_ref[...] = jnp.sum(x, axis=1, keepdims=True) * inv_c
    elif mode == "max":
        def kernel(x_ref, o_ref):
            # max is exact in any ordered dtype: reduce natively, cast the
            # small (TB, 1, THW) result only.
            m = jnp.max(x_ref[...], axis=1, keepdims=True)
            o_ref[...] = m.astype(jnp.float32)
    else:
        raise ValueError(f"unknown mode {mode!r}")
    return kernel


def _make_ctiled_kernel(mode: str, C: int, tc: int, inv_c: float):
    """C-chunked kernel (large C). Grid axis 2 runs over C chunks ("arbitrary");
    the output block is resident across it and used as the accumulator."""
    if mode not in ("avg", "max"):
        raise ValueError(f"unknown mode {mode!r}")
    needs_mask = (C % tc) != 0

    def kernel(x_ref, o_ref):
        k = pl.program_id(2)

        @pl.when(k == 0)
        def _():
            if mode == "avg":
                o_ref[...] = jnp.zeros_like(o_ref)
            else:
                o_ref[...] = jnp.full_like(o_ref, -jnp.inf)

        x = x_ref[...].astype(jnp.float32)                        # (TB, tc, THW)
        if needs_mask:
            ch = k * tc + jax.lax.broadcasted_iota(jnp.int32, x.shape, 1)
            fill = 0.0 if mode == "avg" else -jnp.inf
            x = jnp.where(ch < C, x, fill)

        if mode == "avg":
            o_ref[...] += jnp.sum(x, axis=1, keepdims=True)
        else:
            o_ref[...] = jnp.maximum(o_ref[...],
                                     jnp.max(x, axis=1, keepdims=True))

        if mode == "avg":
            @pl.when(k == pl.num_programs(2) - 1)
            def _():
                o_ref[...] = o_ref[...] * inv_c

    return kernel


def channel_pooling_block(x: jax.Array, mode: str,
                          *, target_block_bytes: int = 8 << 20) -> jax.Array:
    """Pallas equivalent of ChannelPoolingBlock.forward.

    Args:
      x: (B, C, H, W) array (NCHW, like the PyTorch module), any float dtype.
      mode: 'avg' or 'max'.

    Returns:
      (B, 1, H, W) float32 array.
    """
    B, C, H, W = x.shape
    HW = H * W
    itemsize = jnp.dtype(x.dtype).itemsize
    hw_ceil = pl.cdiv(HW, _LANE) * _LANE

    # ---- tile sizing ------------------------------------------------------
    # Channel chunk: whole C unless a full-C column at minimum lane width
    # already blows the block budget (very large C).
    if C * _LANE * itemsize <= target_block_bytes:
        tc = C
    else:
        tc = max(_SUBLANE,
                 (target_block_bytes // (_LANE * itemsize)) // _SUBLANE * _SUBLANE)
        tc = min(tc, C)
    n_c = pl.cdiv(C, tc)

    # Spatial tile: lane-aligned multiple of 128, sized so the input block is
    # ~ target_block_bytes, never larger than the lane-rounded spatial extent.
    thw = max(_LANE, (target_block_bytes // (tc * itemsize)) // _LANE * _LANE)
    thw = min(thw, hw_ceil)
    n_s = pl.cdiv(HW, thw)

    # Batch folding (only when C fits in one chunk): amortize per-step
    # overhead for small C / small HW by packing several batches per block.
    tb = 1
    if n_c == 1:
        blk = tc * thw * itemsize
        tb = max(1, min(B, target_block_bytes // max(blk, 1)))
    n_b = pl.cdiv(B, tb)

    # Explicit VMEM budget: 2 buffers per input/output block + headroom.
    # Safe on v5e's 16 MiB default scoped VMEM and within v7x's 64 MiB.
    in_blk_bytes = tb * tc * thw * itemsize
    out_blk_bytes = tb * 1 * thw * 4
    vmem_limit = min(max(2 * (in_blk_bytes + out_blk_bytes) + (8 << 20),
                         16 << 20),
                     48 << 20)

    x_flat = x.reshape(B, C, HW)
    inv_c = 1.0 / C

    if n_c == 1:
        kernel = _make_simple_kernel(mode, inv_c)
        grid = (n_b, n_s)
        in_specs = [pl.BlockSpec((tb, tc, thw), lambda b, s: (b, 0, s))]
        out_specs = pl.BlockSpec((tb, 1, thw), lambda b, s: (b, 0, s))
        dims = ("parallel", "parallel")
    else:
        kernel = _make_ctiled_kernel(mode, C, tc, inv_c)
        grid = (n_b, n_s, n_c)
        in_specs = [pl.BlockSpec((tb, tc, thw), lambda b, s, k: (b, k, s))]
        out_specs = pl.BlockSpec((tb, 1, thw), lambda b, s, k: (b, 0, s))
        dims = ("parallel", "parallel", "arbitrary")

    out = pl.pallas_call(
        kernel,
        out_shape=jax.ShapeDtypeStruct((B, 1, HW), jnp.float32),
        grid_spec=pltpu.PrefetchScalarGridSpec(
            num_scalar_prefetch=0,
            grid=grid,
            in_specs=in_specs,
            out_specs=out_specs,
        ),
        compiler_params=pltpu.CompilerParams(
            dimension_semantics=dims,
            vmem_limit_bytes=vmem_limit,
        ),
    )(x_flat)

    return out.reshape(B, 1, H, W)


if __name__ == "__main__":
    key = jax.random.PRNGKey(0)
    ok = True

    def ref_pool(xa, mode):
        xf = xa.astype(jnp.float32)
        if mode == "avg":
            return jnp.mean(xf, axis=1, keepdims=True)
        return jnp.max(xf, axis=1, keepdims=True)

    # (shape, dtype, target_block_bytes) — small shapes that still exercise
    # the simple / ragged-spatial / ragged-batch-fold / C-tiled+masked paths.
    cases = [
        ((2, 4, 16, 16), jnp.float32, 8 << 20),   # simple path, batch-folded
        ((2, 4, 5, 7),   jnp.float32, 8 << 20),   # ragged spatial last tile
        ((3, 4, 16, 16), jnp.bfloat16, 4096),     # ragged batch fold, bf16 stream
        ((2, 40, 8, 24), jnp.float32, 16384),     # C-tiled path, masked last chunk
    ]

    for shape, dtype, tbb in cases:
        key, sub = jax.random.split(key)
        x = jax.random.normal(sub, shape, dtype=jnp.float32).astype(dtype)
        for mode in ("avg", "max"):
            y = channel_pooling_block(x, mode, target_block_bytes=tbb)
            jax.block_until_ready(y)

            y_ref = ref_pool(x, mode)
            B, _, H, W = shape
            if y.shape != (B, 1, H, W) or y.dtype != jnp.float32:
                ok = False
            if not jnp.allclose(y, y_ref, atol=1e-5, rtol=1e-5):
                ok = False

    if ok:
        print("KERNEL_OK")
</pallas_src>

<mosaic_0001>
module attributes {stable_mosaic.version = 11 : i64} {
  func.func @kernel(%arg0: i32, %arg1: i32, %arg2: memref<2x4x256xf32, #tpu.memory_space<vmem>>, %arg3: memref<2x1x256xf32, #tpu.memory_space<vmem>>) attributes {dimension_semantics = [#tpu.dimension_semantics<parallel>, #tpu.dimension_semantics<parallel>], iteration_bounds = array<i64: 1, 1>, scalar_prefetch = 0 : i64, scratch_operands = 0 : i64, tpu.core_type = #tpu.core_type<tc>, window_params = [{transform_indices = @transform_0, window_bounds = array<i64: 2, 4, 256>}, {transform_indices = @transform_1, window_bounds = array<i64: 2, 1, 256>}]} {
    %c0 = arith.constant 0 : index
    %c0_0 = arith.constant 0 : index
    %c0_1 = arith.constant 0 : index
    %0 = vector.load %arg2[%c0, %c0_0, %c0_1] : memref<2x4x256xf32, #tpu.memory_space<vmem>>, vector<2x4x256xf32>
    %cst = arith.constant dense<0.000000e+00> : vector<2x256xf32>
    %1 = vector.multi_reduction <add>, %0, %cst [1] : vector<2x4x256xf32> to vector<2x256xf32>
    %2 = vector.shape_cast %1 : vector<2x256xf32> to vector<2x1x256xf32>
    %cst_2 = arith.constant 2.500000e-01 : f32
    %3 = vector.broadcast %cst_2 : f32 to vector<2x1x256xf32>
    %4 = arith.mulf %2, %3 : vector<2x1x256xf32>
    %c0_3 = arith.constant 0 : index
    %c0_4 = arith.constant 0 : index
    %c0_5 = arith.constant 0 : index
    %5 = vector.load %arg3[%c0_3, %c0_4, %c0_5] : memref<2x1x256xf32, #tpu.memory_space<vmem>>, vector<2x1x256xf32>
    tpu.vector_store %arg3[%c0_3, %c0_4, %c0_5], %4 {strides = array<i32>} : memref<2x1x256xf32, #tpu.memory_space<vmem>>, vector<2x1x256xf32>,
    return
  }
  func.func @transform_0(%arg0: i32, %arg1: i32) -> (i32, i32, i32) {
    %c0_i32 = arith.constant 0 : i32
    %c0_i32_0 = arith.constant 0 : i32
    return %arg0, %c0_i32, %arg1 : i32, i32, i32
  }
  func.func @transform_1(%arg0: i32, %arg1: i32) -> (i32, i32, i32) {
    %c0_i32 = arith.constant 0 : i32
    %c0_i32_0 = arith.constant 0 : i32
    return %arg0, %c0_i32, %arg1 : i32, i32, i32
  }
}

</mosaic_0001>

<llo_original>
// kernel: tpu_custom_call.1
$region0: #{tpu_custom_call.1}
  #allocation0 [shape = 'u32[]', space=smem, size = 0x4, offset = 0x4, fixed_abs, tag = 'smem constant byte address 0x4 - core index']
  #allocation1 [shape = 'u32[72,128]{1,0:T(1,128)}', space=vmem, size = 0x9000, scoped, tag = 'internal scratch']
  %s0 = inlined_call_operand.hbm [shape: f32[2,4,256], index: 0, kind: input, shape index: {}]
  %s1 = inlined_call_operand.hbm [shape: f32[2,1,256], index: 1, kind: output, shape index: {}]
  %s2 = sld [smem:[#allocation0]]
  $region18: #{tpu_custom_call.1} parent=0
    _
  %s4 = ssub.s32 1, %s2
  %s5 = scalar_select 0, %s4, %s2
  $region1: #{tpu_custom_call.1} parent=0
    #allocation2 [shape = 'u8[8192]{0}', space=vmem, size = 0x2000, scoped, tag = 'input window, operand 0, single buffered']
    #allocation3 [shape = 's32[1]{0}', space=sflag, size = 0x4, scoped, tag = 'scoped memory for tpu_custom_call.1']
    #allocation4 [shape = 's32[1]{0}', space=sflag, size = 0x4, scoped, tag = 'scoped memory for tpu_custom_call.1']
    #allocation5 [shape = 'u8[2048]{0}', space=vmem, size = 0x800, scoped, tag = 'output window, operand 0, single buffered']
    %6 = vsyncpa [#allocation3], 0
    %7 = vsyncpa [#allocation4], 0
    // Predicated region
    $region2: #{tpu_custom_call.1} parent=1 // pred_check
      _
    $region3: #{tpu_custom_call.1} parent=1 // pred_check_branch
      %9 = sbr.rel (0) target = $region5
    $region4: #{tpu_custom_call.1} parent=1 // pred_region
      %11 = vsyncadd [#allocation3], 0
      %s12 = sshll.u32 %s0, 4
      %s13 = int_to_ptr.hbm [resolvable:$true] %s12
      %s14 = sshll.u32 [#allocation2], 4
      %s15 = int_to_ptr.vmem [resolvable:$true] %s14
      %20 = dma.hbm_to_vmem [thread:$0]  %s13, 256, %s15, [#allocation3], 128, 128, 8
    $region5: #{tpu_custom_call.1} parent=1 // pred_fallthru
      _
    // Predicated region
    $region6: #{tpu_custom_call.1} parent=1 // pred_check
      _
    $region7: #{tpu_custom_call.1} parent=1 // pred_check_branch
      %22 = sbr.rel (0) target = $region9
    $region8: #{tpu_custom_call.1} parent=1 // pred_region
      %24 = dma.done [#allocation3], 256
    $region9: #{tpu_custom_call.1} parent=1 // pred_fallthru
      _
    %v25 = vld [vmem:[#allocation2] sm:$0xff]
    %v26 = vld [vmem:[#allocation2 + $0x8] sm:$0xff]
    %29 = vst [vmem:[#allocation1] ss:$2 sm:$0xff] %v25
    %v30 = vld.sshfl [vmem:[#allocation1] sm:$0xff pattern:$0x75316420]
    %v31 = vld.sshfl [vmem:[#allocation1 + $0x8] sm:$0xff pattern:$0x75316420]
    %s32 = scalar_lea.vmem [#allocation1], 16
    %33 = vst [vmem:[%s32] ss:$2 sm:$0xff] %v26
    %v34 = vld.sshfl [vmem:[#allocation1 + $0x10] sm:$0xff pattern:$0x75316420]
    %v35 = vld.sshfl [vmem:[#allocation1 + $0x18] sm:$0xff pattern:$0x75316420]
    %vm40 = vcmask 1043456
    %v41 = vsel %vm40, %v30, 0.0
    %v42 = vrot.slane %v41, 4
    %v43 = vadd.f32 %v41, %v42
    %v44 = vrot.slane %v43, 2
    %v45 = vadd.f32 %v43, %v44
    %v46 = vrot.slane %v45, 1
    %v47 = vadd.f32 %v45, %v46
    %v48 = vsel %vm40, %v31, 0.0
    %v49 = vrot.slane %v48, 4
    %v50 = vadd.f32 %v48, %v49
    %v51 = vrot.slane %v50, 2
    %v52 = vadd.f32 %v50, %v51
    %v53 = vrot.slane %v52, 1
    %v54 = vadd.f32 %v52, %v53
    %v55 = vsel %vm40, %v34, 0.0
    %v56 = vrot.slane %v55, 4
    %v57 = vadd.f32 %v55, %v56
    %v58 = vrot.slane %v57, 2
    %v59 = vadd.f32 %v57, %v58
    %v60 = vrot.slane %v59, 1
    %v61 = vadd.f32 %v59, %v60
    %v62 = vsel %vm40, %v35, 0.0
    %v63 = vrot.slane %v62, 4
    %v64 = vadd.f32 %v62, %v63
    %v65 = vrot.slane %v64, 2
    %v66 = vadd.f32 %v64, %v65
    %v67 = vrot.slane %v66, 1
    %v68 = vadd.f32 %v66, %v67
    %v69 = vmul.f32 %v47, 0.25
    %v70 = vmul.f32 %v54, 0.25
    %v71 = vmul.f32 %v61, 0.25
    %v72 = vmul.f32 %v68, 0.25
    %v77 = vrot.slane %v70, 7
    %v78 = vrot.slane %v72, 7
    %vm79 = vcmask 1040384
    %v80 = vsel %vm79, %v69, %v77
    %v81 = vsel %vm79, %v71, %v78
    %v84 = vlaneseq
    %vm85 = vcmp.ge.s32.totalorder %v84, 0
    %vm86 = vcmp.lt.s32.totalorder %v84, 256
    %vm87 = vmand %vm85, %vm86
    %88 = vst.msk [vmem:[#allocation5] sm:$0x3] %vm87, %v80
    %89 = vst.msk [vmem:[#allocation5 + $0x2] sm:$0x3] %vm87, %v81
    // Predicated region
    $region10: #{tpu_custom_call.1} parent=1 // pred_check
      _
    $region11: #{tpu_custom_call.1} parent=1 // pred_check_branch
      %91 = sbr.rel (0) target = $region13
    $region12: #{tpu_custom_call.1} parent=1 // pred_region
      %93 = vsyncadd [#allocation4], 0
      %s94 = sshll.u32 [#allocation5], 4
      %s95 = int_to_ptr.vmem [resolvable:$true] %s94
      %s96 = sshll.u32 %s1, 4
      %s97 = int_to_ptr.hbm [resolvable:$true] %s96
      %102 = dma.vmem_to_hbm [thread:$0]  %s95, 64, %s97, [#allocation4], 32, 32, 2
    $region13: #{tpu_custom_call.1} parent=1 // pred_fallthru
      _
    // Predicated region
    $region14: #{tpu_custom_call.1} parent=1 // pred_check
      _
    $region15: #{tpu_custom_call.1} parent=1 // pred_check_branch
      %104 = sbr.rel (0) target = $region17
    $region16: #{tpu_custom_call.1} parent=1 // pred_region
      %106 = dma.done [#allocation4], 64
    $region17: #{tpu_custom_call.1} parent=1 // pred_fallthru
      _
    %107 = vsyncpa [#allocation3], 1
    %108 = vsyncpa [#allocation4], 1

</llo_original>
